<compile_context>
chip_gen: v5e
topology: v5e:2x2
jax: 0.10.0
libtpu: 0.0.40
codegen_flags: <defaults>
</compile_context>

<pallas_src>
import jax
import jax.numpy as jnp
from jax.experimental import pallas as pl
from jax.experimental.pallas import tpu as pltpu

IN_F, HID, OUT_F = 3, 64, 1


def mlp_kernel(x_ref, w1_ref, b1_ref, w2_ref, b2_ref, w3_ref, b3_ref, o_ref):
    x = x_ref[...]            # (3, T)  batch on lanes
    w1 = w1_ref[...]          # (64, 3)
    b1 = b1_ref[...]          # (64, 1)
    b2 = b2_ref[...]          # (64, 1)
    b3 = b3_ref[...]          # (1, 1)

    # Layer 1: K=3 contraction -> do it on the VPU as 3 broadcast FMAs instead
    # of wasting MXU pushes on a depth-3 systolic contraction.
    h1 = (w1[:, 0:1] * x[0:1, :]
          + w1[:, 1:2] * x[1:2, :]
          + w1[:, 2:3] * x[2:3, :]) + b1
    h1 = jnp.maximum(h1, 0.0)                                     # (64, T)

    # Layer 2: 64x64 on the MXU, lane-dense activations.
    h2 = jnp.dot(w2_ref[...], h1, preferred_element_type=jnp.float32) + b2
    h2 = jnp.maximum(h2, 0.0)                                     # (64, T)

    # Layer 3: (1,64)@(64,T) -> (1,T) lane-dense output (no masked partial stores).
    out = jnp.dot(w3_ref[...], h2, preferred_element_type=jnp.float32) + b3
    o_ref[...] = out.astype(o_ref.dtype)


def loss_model_forward(x, params, max_tile=2048):
    """x: (N, 3) f32.  params: PyTorch-layout (W(out,in), b(out,)) x 3."""
    w1, b1, w2, b2, w3, b3 = params
    n = x.shape[0]

    # Lane tile: multiple of 128, capped so tiles stay tiny in VMEM on every
    # generation (a (64, 2048) f32 activation is 512 KiB).
    tile = min(max_tile, ((n + 127) // 128) * 128)
    grid_n = pl.cdiv(n, tile)
    n_pad = grid_n * tile

    # Transpose + pad so batch maps to lanes.
    xt = jnp.pad(x.T.astype(jnp.float32), ((0, 0), (0, n_pad - n)))   # (3, n_pad)
    b1c = b1.reshape(HID, 1)
    b2c = b2.reshape(HID, 1)
    b3c = b3.reshape(OUT_F, 1)

    # TODO(synk): for very large batches, cast x/weights to bf16 at this
    # boundary (keep f32 accumulation) to halve HBM traffic; kept f32 here to
    # preserve exact nn.Linear numerics.
    flops = 2 * n_pad * (IN_F * HID + HID * HID + HID * OUT_F)
    bytes_accessed = (xt.size + n_pad * OUT_F
                      + sum(int(p.size) for p in params)) * 4

    out_t = pl.pallas_call(
        mlp_kernel,
        out_shape=jax.ShapeDtypeStruct((OUT_F, n_pad), jnp.float32),
        grid_spec=pltpu.PrefetchScalarGridSpec(
            num_scalar_prefetch=0,
            grid=(grid_n,),
            in_specs=[
                pl.BlockSpec((IN_F, tile), lambda i: (0, i)),     # x tile (pipelined)
                pl.BlockSpec((HID, IN_F), lambda i: (0, 0)),      # W1 resident
                pl.BlockSpec((HID, 1), lambda i: (0, 0)),         # b1 resident
                pl.BlockSpec((HID, HID), lambda i: (0, 0)),       # W2 resident
                pl.BlockSpec((HID, 1), lambda i: (0, 0)),         # b2 resident
                pl.BlockSpec((OUT_F, HID), lambda i: (0, 0)),     # W3 resident
                pl.BlockSpec((OUT_F, 1), lambda i: (0, 0)),       # b3 resident
            ],
            out_specs=pl.BlockSpec((OUT_F, tile), lambda i: (0, i)),
        ),
        compiler_params=pltpu.CompilerParams(
            dimension_semantics=("parallel",),        # megacore batch sharding on v7x
            vmem_limit_bytes=32 * 1024 * 1024,
        ),
        cost_estimate=pl.CostEstimate(
            flops=flops, transcendentals=0, bytes_accessed=bytes_accessed),
    )(xt, w1, b1c, w2, b2c, w3, b3c)

    return out_t[:, :n].T                                          # (N, 1)


def init_params(key):
    # PyTorch nn.Linear default init: W (out,in), b (out,), both
    # U(-1/sqrt(fan_in), 1/sqrt(fan_in)).
    dims = [(IN_F, HID), (HID, HID), (HID, OUT_F)]
    params = []
    for fan_in, fan_out in dims:
        key, kw, kb = jax.random.split(key, 3)
        bound = 1.0 / jnp.sqrt(fan_in)
        w = jax.random.uniform(kw, (fan_out, fan_in), jnp.float32, -bound, bound)
        b = jax.random.uniform(kb, (fan_out,), jnp.float32, -bound, bound)
        params += [w, b]
    return tuple(params)


def reference_forward(x, params):
    w1, b1, w2, b2, w3, b3 = params
    h1 = jnp.maximum(x @ w1.T + b1, 0.0)
    h2 = jnp.maximum(h1 @ w2.T + b2, 0.0)
    return h2 @ w3.T + b3


if __name__ == "__main__":
    key = jax.random.PRNGKey(0)
    key, kx = jax.random.split(key)
    x = jax.random.normal(kx, (8, IN_F), jnp.float32)   # batch=8, in_features=3
    params = init_params(key)

    out = loss_model_forward(x, params)
    out = jax.block_until_ready(out)

    ref = reference_forward(x, params)
    assert out.shape == (8, 1)
    assert jnp.allclose(out, ref, atol=1e-5, rtol=1e-5)
    print("KERNEL_OK")
</pallas_src>

<mosaic_0001>
module attributes {stable_mosaic.version = 11 : i64} {
  func.func @mlp_kernel(%arg0: i32, %arg1: memref<3x128xf32, #tpu.memory_space<vmem>>, %arg2: memref<64x3xf32, #tpu.memory_space<vmem>>, %arg3: memref<64x1xf32, #tpu.memory_space<vmem>>, %arg4: memref<64x64xf32, #tpu.memory_space<vmem>>, %arg5: memref<64x1xf32, #tpu.memory_space<vmem>>, %arg6: memref<1x64xf32, #tpu.memory_space<vmem>>, %arg7: memref<1x1xf32, #tpu.memory_space<vmem>>, %arg8: memref<1x128xf32, #tpu.memory_space<vmem>>) attributes {dimension_semantics = [#tpu.dimension_semantics<parallel>], iteration_bounds = array<i64: 1>, scalar_prefetch = 0 : i64, scratch_operands = 0 : i64, tpu.core_type = #tpu.core_type<tc>, window_params = [{transform_indices = @transform_0, window_bounds = array<i64: 3, 128>}, {pipeline_mode = #tpu.pipeline_mode<synchronous>, transform_indices = @transform_1, window_bounds = array<i64: 64, 3>}, {pipeline_mode = #tpu.pipeline_mode<synchronous>, transform_indices = @transform_2, window_bounds = array<i64: 64, 1>}, {pipeline_mode = #tpu.pipeline_mode<synchronous>, transform_indices = @transform_3, window_bounds = array<i64: 64, 64>}, {pipeline_mode = #tpu.pipeline_mode<synchronous>, transform_indices = @transform_4, window_bounds = array<i64: 64, 1>}, {pipeline_mode = #tpu.pipeline_mode<synchronous>, transform_indices = @transform_5, window_bounds = array<i64: 1, 64>}, {pipeline_mode = #tpu.pipeline_mode<synchronous>, transform_indices = @transform_6, window_bounds = array<i64: 1, 1>}, {transform_indices = @transform_7, window_bounds = array<i64: 1, 128>}]} {
    %c0 = arith.constant 0 : index
    %c0_0 = arith.constant 0 : index
    %0 = vector.load %arg1[%c0, %c0_0] : memref<3x128xf32, #tpu.memory_space<vmem>>, vector<3x128xf32>
    %c0_1 = arith.constant 0 : index
    %c0_2 = arith.constant 0 : index
    %1 = vector.load %arg2[%c0_1, %c0_2] : memref<64x3xf32, #tpu.memory_space<vmem>>, vector<64x3xf32>
    %c0_3 = arith.constant 0 : index
    %c0_4 = arith.constant 0 : index
    %2 = vector.load %arg3[%c0_3, %c0_4] : memref<64x1xf32, #tpu.memory_space<vmem>>, vector<64x1xf32>
    %c0_5 = arith.constant 0 : index
    %c0_6 = arith.constant 0 : index
    %3 = vector.load %arg5[%c0_5, %c0_6] : memref<64x1xf32, #tpu.memory_space<vmem>>, vector<64x1xf32>
    %c0_7 = arith.constant 0 : index
    %c0_8 = arith.constant 0 : index
    %4 = vector.load %arg7[%c0_7, %c0_8] : memref<1x1xf32, #tpu.memory_space<vmem>>, vector<1x1xf32>
    %5 = vector.extract_strided_slice %1 {offsets = [0, 0], sizes = [64, 1], strides = [1, 1]} : vector<64x3xf32> to vector<64x1xf32>
    %6 = vector.extract_strided_slice %0 {offsets = [0, 0], sizes = [1, 128], strides = [1, 1]} : vector<3x128xf32> to vector<1x128xf32>
    %7 = vector.broadcast %5 : vector<64x1xf32> to vector<64x128xf32>
    %8 = vector.broadcast %6 : vector<1x128xf32> to vector<64x128xf32>
    %9 = arith.mulf %7, %8 : vector<64x128xf32>
    %10 = vector.extract_strided_slice %1 {offsets = [0, 1], sizes = [64, 1], strides = [1, 1]} : vector<64x3xf32> to vector<64x1xf32>
    %11 = vector.extract_strided_slice %0 {offsets = [1, 0], sizes = [1, 128], strides = [1, 1]} : vector<3x128xf32> to vector<1x128xf32>
    %12 = vector.broadcast %10 : vector<64x1xf32> to vector<64x128xf32>
    %13 = vector.broadcast %11 : vector<1x128xf32> to vector<64x128xf32>
    %14 = arith.mulf %12, %13 : vector<64x128xf32>
    %15 = arith.addf %9, %14 : vector<64x128xf32>
    %16 = vector.extract_strided_slice %1 {offsets = [0, 2], sizes = [64, 1], strides = [1, 1]} : vector<64x3xf32> to vector<64x1xf32>
    %17 = vector.extract_strided_slice %0 {offsets = [2, 0], sizes = [1, 128], strides = [1, 1]} : vector<3x128xf32> to vector<1x128xf32>
    %18 = vector.broadcast %16 : vector<64x1xf32> to vector<64x128xf32>
    %19 = vector.broadcast %17 : vector<1x128xf32> to vector<64x128xf32>
    %20 = arith.mulf %18, %19 : vector<64x128xf32>
    %21 = arith.addf %15, %20 : vector<64x128xf32>
    %22 = vector.broadcast %2 : vector<64x1xf32> to vector<64x128xf32>
    %23 = arith.addf %21, %22 : vector<64x128xf32>
    %cst = arith.constant 0.000000e+00 : f32
    %24 = vector.broadcast %cst : f32 to vector<64x128xf32>
    %25 = arith.maximumf %23, %24 : vector<64x128xf32>
    %c0_9 = arith.constant 0 : index
    %c0_10 = arith.constant 0 : index
    %26 = vector.load %arg4[%c0_9, %c0_10] : memref<64x64xf32, #tpu.memory_space<vmem>>, vector<64x64xf32>
    %cst_11 = arith.constant dense<0.000000e+00> : vector<64x128xf32>
    %27 = tpu.matmul %26, %25, %cst_11 {dimension_numbers = #tpu.dot_dimension_numbers<[1], [0], [0], [1], [0, 0, 1, 1], [], []>} : vector<64x64xf32>, vector<64x128xf32>, vector<64x128xf32> -> vector<64x128xf32>
    %28 = vector.broadcast %3 : vector<64x1xf32> to vector<64x128xf32>
    %29 = arith.addf %27, %28 : vector<64x128xf32>
    %cst_12 = arith.constant 0.000000e+00 : f32
    %30 = vector.broadcast %cst_12 : f32 to vector<64x128xf32>
    %31 = arith.maximumf %29, %30 : vector<64x128xf32>
    %c0_13 = arith.constant 0 : index
    %c0_14 = arith.constant 0 : index
    %32 = vector.load %arg6[%c0_13, %c0_14] : memref<1x64xf32, #tpu.memory_space<vmem>>, vector<1x64xf32>
    %cst_15 = arith.constant dense<0.000000e+00> : vector<1x128xf32>
    %33 = tpu.matmul %32, %31, %cst_15 {dimension_numbers = #tpu.dot_dimension_numbers<[1], [0], [0], [1], [0, 0, 1, 1], [], []>} : vector<1x64xf32>, vector<64x128xf32>, vector<1x128xf32> -> vector<1x128xf32>
    %34 = vector.broadcast %4 : vector<1x1xf32> to vector<1x128xf32>
    %35 = arith.addf %33, %34 : vector<1x128xf32>
    %c0_16 = arith.constant 0 : index
    %c0_17 = arith.constant 0 : index
    %36 = vector.load %arg8[%c0_16, %c0_17] : memref<1x128xf32, #tpu.memory_space<vmem>>, vector<1x128xf32>
    tpu.vector_store %arg8[%c0_16, %c0_17], %35 {strides = array<i32>} : memref<1x128xf32, #tpu.memory_space<vmem>>, vector<1x128xf32>,
    return
  }
  func.func @transform_0(%arg0: i32) -> (i32, i32) {
    %c0_i32 = arith.constant 0 : i32
    %c0_i32_0 = arith.constant 0 : i32
    return %c0_i32, %arg0 : i32, i32
  }
  func.func @transform_1(%arg0: i32) -> (i32, i32) {
    %c0_i32 = arith.constant 0 : i32
    %c0_i32_0 = arith.constant 0 : i32
    %c0_i32_1 = arith.constant 0 : i32
    return %c0_i32, %c0_i32_0 : i32, i32
  }
  func.func @transform_2(%arg0: i32) -> (i32, i32) {
    %c0_i32 = arith.constant 0 : i32
    %c0_i32_0 = arith.constant 0 : i32
    %c0_i32_1 = arith.constant 0 : i32
    return %c0_i32, %c0_i32_0 : i32, i32
  }
  func.func @transform_3(%arg0: i32) -> (i32, i32) {
    %c0_i32 = arith.constant 0 : i32
    %c0_i32_0 = arith.constant 0 : i32
    %c0_i32_1 = arith.constant 0 : i32
    return %c0_i32, %c0_i32_0 : i32, i32
  }
  func.func @transform_4(%arg0: i32) -> (i32, i32) {
    %c0_i32 = arith.constant 0 : i32
    %c0_i32_0 = arith.constant 0 : i32
    %c0_i32_1 = arith.constant 0 : i32
    return %c0_i32, %c0_i32_0 : i32, i32
  }
  func.func @transform_5(%arg0: i32) -> (i32, i32) {
    %c0_i32 = arith.constant 0 : i32
    %c0_i32_0 = arith.constant 0 : i32
    %c0_i32_1 = arith.constant 0 : i32
    return %c0_i32, %c0_i32_0 : i32, i32
  }
  func.func @transform_6(%arg0: i32) -> (i32, i32) {
    %c0_i32 = arith.constant 0 : i32
    %c0_i32_0 = arith.constant 0 : i32
    %c0_i32_1 = arith.constant 0 : i32
    return %c0_i32, %c0_i32_0 : i32, i32
  }
  func.func @transform_7(%arg0: i32) -> (i32, i32) {
    %c0_i32 = arith.constant 0 : i32
    %c0_i32_0 = arith.constant 0 : i32
    return %c0_i32, %arg0 : i32, i32
  }
}

</mosaic_0001>

<llo_original>
// kernel: tpu_custom_call.1
$region0: #{tpu_custom_call.1}
  #allocation0 [shape = 'u32[]', space=smem, size = 0x4, offset = 0x4, fixed_abs, tag = 'smem constant byte address 0x4 - core index']
  #allocation1 [shape = 'u32[72,128]{1,0:T(1,128)}', space=vmem, size = 0x9000, scoped, tag = 'internal scratch']
  #allocation2 [shape = 'f32[1,1]{1,0:T(1,128)S(1)}', space=vmem, size = 0x200, scoped, tag = 'scoped memory for tpu_custom_call.1']
  %s0 = inlined_call_operand.vmem [shape: f32[3,128], index: 0, kind: input, shape index: {}]
  %s1 = inlined_call_operand.vmem [shape: f32[64,3], index: 1, kind: input, shape index: {}]
  %s2 = inlined_call_operand.vmem [shape: f32[64,1], index: 2, kind: input, shape index: {}]
  %s3 = inlined_call_operand.vmem [shape: f32[64,64], index: 3, kind: input, shape index: {}]
  %s4 = inlined_call_operand.vmem [shape: f32[64,1], index: 4, kind: input, shape index: {}]
  %s5 = inlined_call_operand.vmem [shape: f32[1,64], index: 5, kind: input, shape index: {}]
  %s6 = inlined_call_operand.<no memory space> [shape: f32[1,1], index: 6, kind: input, shape index: {}]
  %s7 = inlined_call_operand.hbm [shape: f32[1,128], index: 7, kind: output, shape index: {}]
  %s8 = sld [smem:[#allocation0]]
  $region38: #{tpu_custom_call.1} parent=0
    _
  %s10 = ssub.s32 1, %s8
  %s11 = scalar_select 0, %s10, %s8
  %v12 = vstv %s6
  %13 = vst [vmem:[#allocation2] sm:$0x1] %v12
  $region1: #{tpu_custom_call.1} parent=0
    #allocation3 [shape = 'u8[512]{0}', space=vmem, size = 0x400, scoped, tag = 'output window, operand 0, single buffered']
    #allocation4 [shape = 's32[1]{0}', space=sflag, size = 0x4, scoped, tag = 'scoped memory for tpu_custom_call.1']
    %14 = vsyncpa [#allocation4], 0
    // Predicated region
    $region2: #{tpu_custom_call.1} parent=1 // pred_check
      _
    $region3: #{tpu_custom_call.1} parent=1 // pred_check_branch
      %16 = sbr.rel (0) target = $region5
    $region4: #{tpu_custom_call.1} parent=1 // pred_region
      _
    $region5: #{tpu_custom_call.1} parent=1 // pred_fallthru
      _
    // Predicated region
    $region6: #{tpu_custom_call.1} parent=1 // pred_check
      _
    $region7: #{tpu_custom_call.1} parent=1 // pred_check_branch
      %18 = sbr.rel (0) target = $region9
    $region8: #{tpu_custom_call.1} parent=1 // pred_region
      _
    $region9: #{tpu_custom_call.1} parent=1 // pred_fallthru
      _
    // Predicated region
    $region10: #{tpu_custom_call.1} parent=1 // pred_check
      _
    $region11: #{tpu_custom_call.1} parent=1 // pred_check_branch
      %20 = sbr.rel (0) target = $region13
    $region12: #{tpu_custom_call.1} parent=1 // pred_region
      _
    $region13: #{tpu_custom_call.1} parent=1 // pred_fallthru
      _
    // Predicated region
    $region14: #{tpu_custom_call.1} parent=1 // pred_check
      _
    $region15: #{tpu_custom_call.1} parent=1 // pred_check_branch
      %22 = sbr.rel (0) target = $region17
    $region16: #{tpu_custom_call.1} parent=1 // pred_region
      _
    $region17: #{tpu_custom_call.1} parent=1 // pred_fallthru
      _
    // Predicated region
    $region18: #{tpu_custom_call.1} parent=1 // pred_check
      _
    $region19: #{tpu_custom_call.1} parent=1 // pred_check_branch
      %24 = sbr.rel (0) target = $region21
    $region20: #{tpu_custom_call.1} parent=1 // pred_region
      _
    $region21: #{tpu_custom_call.1} parent=1 // pred_fallthru
      _
    // Predicated region
    $region22: #{tpu_custom_call.1} parent=1 // pred_check
      _
    $region23: #{tpu_custom_call.1} parent=1 // pred_check_branch
      %26 = sbr.rel (0) target = $region25
    $region24: #{tpu_custom_call.1} parent=1 // pred_region
      _
    $region25: #{tpu_custom_call.1} parent=1 // pred_fallthru
      _
    // Predicated region
    $region26: #{tpu_custom_call.1} parent=1 // pred_check
      _
    $region27: #{tpu_custom_call.1} parent=1 // pred_check_branch
      %28 = sbr.rel (0) target = $region29
    $region28: #{tpu_custom_call.1} parent=1 // pred_region
      _
    $region29: #{tpu_custom_call.1} parent=1 // pred_fallthru
      _
    %v29 = vld [vmem:[%s0] sm:$0x7]
    %v30 = vld [vmem:[%s1] sm:$0xff]
    %v31 = vld [vmem:[%s1 + $0x8] sm:$0xff]
    %v32 = vld [vmem:[%s1 + $0x10] sm:$0xff]
    %v33 = vld [vmem:[%s1 + $0x18] sm:$0xff]
    %v34 = vld [vmem:[%s1 + $0x20] sm:$0xff]
    %v35 = vld [vmem:[%s1 + $0x28] sm:$0xff]
    %v36 = vld [vmem:[%s1 + $0x30] sm:$0xff]
    %v37 = vld [vmem:[%s1 + $0x38] sm:$0xff]
    %v38 = vld [vmem:[%s2] sm:$0xff]
    %v39 = vld [vmem:[%s2 + $0x8] sm:$0xff]
    %v40 = vld [vmem:[%s2 + $0x10] sm:$0xff]
    %v41 = vld [vmem:[%s2 + $0x18] sm:$0xff]
    %v42 = vld [vmem:[%s2 + $0x20] sm:$0xff]
    %v43 = vld [vmem:[%s2 + $0x28] sm:$0xff]
    %v44 = vld [vmem:[%s2 + $0x30] sm:$0xff]
    %v45 = vld [vmem:[%s2 + $0x38] sm:$0xff]
    %v46 = vld [vmem:[%s4] sm:$0xff]
    %v47 = vld [vmem:[%s4 + $0x8] sm:$0xff]
    %v48 = vld [vmem:[%s4 + $0x10] sm:$0xff]
    %v49 = vld [vmem:[%s4 + $0x18] sm:$0xff]
    %v50 = vld [vmem:[%s4 + $0x20] sm:$0xff]
    %v51 = vld [vmem:[%s4 + $0x28] sm:$0xff]
    %v52 = vld [vmem:[%s4 + $0x30] sm:$0xff]
    %v53 = vld [vmem:[%s4 + $0x38] sm:$0xff]
    %v54 = vld [vmem:[#allocation2] sm:$0x1]
    %56 = vset.pattern.permute.xlu0 0
    %57 = vperm.xlu0 %56, %v30
    %v58 = vpop.permute.xlu0 %57
    %61 = vset.pattern.permute.xlu0 0
    %62 = vperm.xlu0 %61, %v31
    %v63 = vpop.permute.xlu0 %62
    %66 = vset.pattern.permute.xlu0 0
    %67 = vperm.xlu0 %66, %v32
    %v68 = vpop.permute.xlu0 %67
    %71 = vset.pattern.permute.xlu0 0
    %72 = vperm.xlu0 %71, %v33
    %v73 = vpop.permute.xlu0 %72
    %76 = vset.pattern.permute.xlu0 0
    %77 = vperm.xlu0 %76, %v34
    %v78 = vpop.permute.xlu0 %77
    %81 = vset.pattern.permute.xlu0 0
    %82 = vperm.xlu0 %81, %v35
    %v83 = vpop.permute.xlu0 %82
    %86 = vset.pattern.permute.xlu0 0
    %87 = vperm.xlu0 %86, %v36
    %v88 = vpop.permute.xlu0 %87
    %91 = vset.pattern.permute.xlu0 0
    %92 = vperm.xlu0 %91, %v37
    %v93 = vpop.permute.xlu0 %92
    %v95 = vperm.slane %v29, 0
    %v96 = vmul.f32 %v58, %v95
    %v97 = vmul.f32 %v63, %v95
    %v98 = vmul.f32 %v68, %v95
    %v99 = vmul.f32 %v73, %v95
    %v100 = vmul.f32 %v78, %v95
    %v101 = vmul.f32 %v83, %v95
    %v102 = vmul.f32 %v88, %v95
    %v103 = vmul.f32 %v93, %v95
    %104 = vset.pattern.permute.xlu0 1
    %105 = vperm.xlu0 %104, %v30
    %v106 = vpop.permute.xlu0 %105
    %108 = vset.pattern.permute.xlu0 1
    %109 = vperm.xlu0 %108, %v31
    %v110 = vpop.permute.xlu0 %109
    %112 = vset.pattern.permute.xlu0 1
    %113 = vperm.xlu0 %112, %v32
    %v114 = vpop.permute.xlu0 %113
    %116 = vset.pattern.permute.xlu0 1
    %117 = vperm.xlu0 %116, %v33
    %v118 = vpop.permute.xlu0 %117
    %120 = vset.pattern.permute.xlu0 1
    %121 = vperm.xlu0 %120, %v34
    %v122 = vpop.permute.xlu0 %121
    %124 = vset.pattern.permute.xlu0 1
    %125 = vperm.xlu0 %124, %v35
    %v126 = vpop.permute.xlu0 %125
    %128 = vset.pattern.permute.xlu0 1
    %129 = vperm.xlu0 %128, %v36
    %v130 = vpop.permute.xlu0 %129
    %132 = vset.pattern.permute.xlu0 1
    %133 = vperm.xlu0 %132, %v37
    %v134 = vpop.permute.xlu0 %133
    %v136 = vperm.slane %v29, 1
    %v137 = vmul.f32 %v106, %v136
    %v138 = vmul.f32 %v110, %v136
    %v139 = vmul.f32 %v114, %v136
    %v140 = vmul.f32 %v118, %v136
    %v141 = vmul.f32 %v122, %v136
    %v142 = vmul.f32 %v126, %v136
    %v143 = vmul.f32 %v130, %v136
    %v144 = vmul.f32 %v134, %v136
    %v145 = vadd.f32 %v96, %v137
    %v146 = vadd.f32 %v97, %v138
    %v147 = vadd.f32 %v98, %v139
    %v148 = vadd.f32 %v99, %v140
    %v149 = vadd.f32 %v100, %v141
    %v150 = vadd.f32 %v101, %v142
    %v151 = vadd.f32 %v102, %v143
    %v152 = vadd.f32 %v103, %v144
    %153 = vset.pattern.permute.xlu0 2
    %154 = vperm.xlu0 %153, %v30
    %v155 = vpop.permute.xlu0 %154
    %157 = vset.pattern.permute.xlu0 2
    %158 = vperm.xlu0 %157, %v31
    %v159 = vpop.permute.xlu0 %158
    %161 = vset.pattern.permute.xlu0 2
    %162 = vperm.xlu0 %161, %v32
    %v163 = vpop.permute.xlu0 %162
    %165 = vset.pattern.permute.xlu0 2
    %166 = vperm.xlu0 %165, %v33
    %v167 = vpop.permute.xlu0 %166
    %169 = vset.pattern.permute.xlu0 2
    %170 = vperm.xlu0 %169, %v34
    %v171 = vpop.permute.xlu0 %170
    %173 = vset.pattern.permute.xlu0 2
    %174 = vperm.xlu0 %173, %v35
    %v175 = vpop.permute.xlu0 %174
    %177 = vset.pattern.permute.xlu0 2
    %178 = vperm.xlu0 %177, %v36
    %v179 = vpop.permute.xlu0 %178
    %181 = vset.pattern.permute.xlu0 2
    %182 = vperm.xlu0 %181, %v37
    %v183 = vpop.permute.xlu0 %182
    %v185 = vperm.slane %v29, 2
    %v186 = vmul.f32 %v155, %v185
    %v187 = vmul.f32 %v159, %v185
    %v188 = vmul.f32 %v163, %v185
    %v189 = vmul.f32 %v167, %v185
    %v190 = vmul.f32 %v171, %v185
    %v191 = vmul.f32 %v175, %v185
    %v192 = vmul.f32 %v179, %v185
    %v193 = vmul.f32 %v183, %v185
    %v194 = vadd.f32 %v145, %v186
    %v195 = vadd.f32 %v146, %v187
    %v196 = vadd.f32 %v147, %v188
    %v197 = vadd.f32 %v148, %v189
    %v198 = vadd.f32 %v149, %v190
    %v199 = vadd.f32 %v150, %v191
    %v200 = vadd.f32 %v151, %v192
    %v201 = vadd.f32 %v152, %v193
    %203 = vset.pattern.permute.xlu0 0
    %204 = vperm.xlu0 %203, %v38
    %v205 = vpop.permute.xlu0 %204
    %208 = vset.pattern.permute.xlu0 0
    %209 = vperm.xlu0 %208, %v39
    %v210 = vpop.permute.xlu0 %209
    %213 = vset.pattern.permute.xlu0 0
    %214 = vperm.xlu0 %213, %v40
    %v215 = vpop.permute.xlu0 %214
    %218 = vset.pattern.permute.xlu0 0
    %219 = vperm.xlu0 %218, %v41
    %v220 = vpop.permute.xlu0 %219
    %223 = vset.pattern.permute.xlu0 0
    %224 = vperm.xlu0 %223, %v42
    %v225 = vpop.permute.xlu0 %224
    %228 = vset.pattern.permute.xlu0 0
    %229 = vperm.xlu0 %228, %v43
    %v230 = vpop.permute.xlu0 %229
    %233 = vset.pattern.permute.xlu0 0
    %234 = vperm.xlu0 %233, %v44
    %v235 = vpop.permute.xlu0 %234
    %238 = vset.pattern.permute.xlu0 0
    %239 = vperm.xlu0 %238, %v45
    %v240 = vpop.permute.xlu0 %239
    %v242 = vadd.f32 %v194, %v205
    %v243 = vadd.f32 %v195, %v210
    %v244 = vadd.f32 %v196, %v215
    %v245 = vadd.f32 %v197, %v220
    %v246 = vadd.f32 %v198, %v225
    %v247 = vadd.f32 %v199, %v230
    %v248 = vadd.f32 %v200, %v235
    %v249 = vadd.f32 %v201, %v240
    %v250 = vmax.f32 %v242, 0.0
    %v251 = vmax.f32 %v243, 0.0
    %v252 = vmax.f32 %v244, 0.0
    %v253 = vmax.f32 %v245, 0.0
    %v254 = vmax.f32 %v246, 0.0
    %v255 = vmax.f32 %v247, 0.0
    %v256 = vmax.f32 %v248, 0.0
    %v257 = vmax.f32 %v249, 0.0
    %v258 = vld [vmem:[%s3] sm:$0xff]
    %v259 = vld [vmem:[%s3 + $0x8] sm:$0xff]
    %v260 = vld [vmem:[%s3 + $0x10] sm:$0xff]
    %v261 = vld [vmem:[%s3 + $0x18] sm:$0xff]
    %v262 = vld [vmem:[%s3 + $0x20] sm:$0xff]
    %v263 = vld [vmem:[%s3 + $0x28] sm:$0xff]
    %v264 = vld [vmem:[%s3 + $0x30] sm:$0xff]
    %v265 = vld [vmem:[%s3 + $0x38] sm:$0xff]
    %267 = vset.pattern.permute.xlu0 0
    %268 = vperm.xlu0 %267, %v46
    %v269 = vpop.permute.xlu0 %268
    %272 = vset.pattern.permute.xlu0 0
    %273 = vperm.xlu0 %272, %v47
    %v274 = vpop.permute.xlu0 %273
    %277 = vset.pattern.permute.xlu0 0
    %278 = vperm.xlu0 %277, %v48
    %v279 = vpop.permute.xlu0 %278
    %282 = vset.pattern.permute.xlu0 0
    %283 = vperm.xlu0 %282, %v49
    %v284 = vpop.permute.xlu0 %283
    %287 = vset.pattern.permute.xlu0 0
    %288 = vperm.xlu0 %287, %v50
    %v289 = vpop.permute.xlu0 %288
    %292 = vset.pattern.permute.xlu0 0
    %293 = vperm.xlu0 %292, %v51
    %v294 = vpop.permute.xlu0 %293
    %297 = vset.pattern.permute.xlu0 0
    %298 = vperm.xlu0 %297, %v52
    %v299 = vpop.permute.xlu0 %298
    %302 = vset.pattern.permute.xlu0 0
    %303 = vperm.xlu0 %302, %v53
    %v304 = vpop.permute.xlu0 %303
    %vm306 = vcmask 523264
    %v308 = vsel %vm306, %v258, 0
    %v311 = vsel %vm306, %v259, 0
    %v314 = vsel %vm306, %v260, 0
    %v317 = vsel %vm306, %v261, 0
    %v320 = vsel %vm306, %v262, 0
    %v323 = vsel %vm306, %v263, 0
    %v326 = vsel %vm306, %v264, 0
    %v329 = vsel %vm306, %v265, 0
    %331 = vmatpush.msra.mxu0 0.0
    %332 = vmatpush.msra.mxu0 0.0
    %333 = vmatpush.msra.mxu0 0.0
    %334 = vmatpush.msra.mxu0 0.0
    %335 = vmatpush.msra.mxu0 0.0
    %336 = vmatpush.msra.mxu0 0.0
    %337 = vmatpush.msra.mxu0 0.0
    %338 = vmatpush.msra.mxu0 0.0
    %339 = vmatpush.msra.mxu0 %v257
    %340 = vmatpush.msra.mxu0 %v256
    %341 = vmatpush.msra.mxu0 %v255
    %342 = vmatpush.msra.mxu0 %v254
    %343 = vmatpush.msra.mxu0 %v253
    %344 = vmatpush.msra.mxu0 %v252
    %345 = vmatpush.msra.mxu0 %v251
    %346 = vmatpush.msra.mxu0 %v250
    %347 = vmatmul.f32.gmra.mxu0 %v308
    %v348 = vpop.f32.mrf.mxu0
    %v349 = vadd.f32 %v269, %v348
    %350 = vmatmul.f32.gmra.mxu0 %v311
    %v351 = vpop.f32.mrf.mxu0
    %v352 = vadd.f32 %v274, %v351
    %353 = vmatmul.f32.gmra.mxu0 %v314
    %v354 = vpop.f32.mrf.mxu0
    %v355 = vadd.f32 %v279, %v354
    %356 = vmatmul.f32.gmra.mxu0 %v317
    %v357 = vpop.f32.mrf.mxu0
    %v358 = vadd.f32 %v284, %v357
    %359 = vmatmul.f32.gmra.mxu0 %v320
    %v360 = vpop.f32.mrf.mxu0
    %v361 = vadd.f32 %v289, %v360
    %362 = vmatmul.f32.gmra.mxu0 %v323
    %v363 = vpop.f32.mrf.mxu0
    %v364 = vadd.f32 %v294, %v363
    %365 = vmatmul.f32.gmra.mxu0 %v326
    %v366 = vpop.f32.mrf.mxu0
    %v367 = vadd.f32 %v299, %v366
    %368 = vmatmul.f32.gmra.mxu0 %v329
    %v369 = vpop.f32.mrf.mxu0
    %v370 = vadd.f32 %v304, %v369
    %371 = vdwg.mxu0
    %v372 = vmax.f32 %v349, 0.0
    %v373 = vmax.f32 %v352, 0.0
    %v374 = vmax.f32 %v355, 0.0
    %v375 = vmax.f32 %v358, 0.0
    %v376 = vmax.f32 %v361, 0.0
    %v377 = vmax.f32 %v364, 0.0
    %v378 = vmax.f32 %v367, 0.0
    %v379 = vmax.f32 %v370, 0.0
    %v380 = vld [vmem:[%s5] sm:$0x1]
    %382 = vset.pattern.permute.xlu0 0
    %383 = vperm.xlu0 %382, %v54
    %v384 = vpop.permute.xlu0 %383
    %v386 = vperm.slane %v384, 0
    %v388 = vsel %vm306, %v380, 0
    %390 = vmatpush.msra.mxu0 0.0
    %391 = vmatpush.msra.mxu0 0.0
    %392 = vmatpush.msra.mxu0 0.0
    %393 = vmatpush.msra.mxu0 0.0
    %394 = vmatpush.msra.mxu0 0.0
    %395 = vmatpush.msra.mxu0 0.0
    %396 = vmatpush.msra.mxu0 0.0
    %397 = vmatpush.msra.mxu0 0.0
    %398 = vmatpush.msra.mxu0 %v379
    %399 = vmatpush.msra.mxu0 %v378
    %400 = vmatpush.msra.mxu0 %v377
    %401 = vmatpush.msra.mxu0 %v376
    %402 = vmatpush.msra.mxu0 %v375
    %403 = vmatpush.msra.mxu0 %v374
    %404 = vmatpush.msra.mxu0 %v373
    %405 = vmatpush.msra.mxu0 %v372
    %406 = vmatmul.f32.gmra.mxu0 %v388
    %v407 = vpop.f32.mrf.mxu0
    %v408 = vadd.f32 %v386, %v407
    %409 = vdwg.mxu0
    %410 = vst [vmem:[#allocation3] sm:$0x1] %v408
    // Predicated region
    $region30: #{tpu_custom_call.1} parent=1 // pred_check
      _
    $region31: #{tpu_custom_call.1} parent=1 // pred_check_branch
      %412 = sbr.rel (0) target = $region33
    $region32: #{tpu_custom_call.1} parent=1 // pred_region
      %414 = vsyncadd [#allocation4], 0
      %s416 = sshll.u32 [#allocation3], 4
      %s417 = int_to_ptr.vmem [resolvable:$true] %s416
      %s418 = sshll.u32 %s7, 4
      %s419 = int_to_ptr.hbm [resolvable:$true] %s418
      %421 = dma.vmem_to_hbm [thread:$0]  %s417, 16, %s419, [#allocation4]
    $region33: #{tpu_custom_call.1} parent=1 // pred_fallthru
      _
    // Predicated region
    $region34: #{tpu_custom_call.1} parent=1 // pred_check
      _
    $region35: #{tpu_custom_call.1} parent=1 // pred_check_branch
      %423 = sbr.rel (0) target = $region37
    $region36: #{tpu_custom_call.1} parent=1 // pred_region
      %425 = dma.done [#allocation4], 16
    $region37: #{tpu_custom_call.1} parent=1 // pred_fallthru
      _
    %426 = vsyncpa [#allocation4], 1

</llo_original>
